<compile_context>
chip_gen: v7x
topology: tpu7x:2x2x1
jax: 0.10.0
libtpu: 0.0.40
codegen_flags: <defaults>
</compile_context>

<pallas_src>
import functools
import math

import jax
import jax.numpy as jnp
from jax.experimental import pallas as pl
from jax.experimental.pallas import tpu as pltpu


def _sigmoid_mean_pool_kernel(x_ref, w_ref, b_ref, o_ref, *, inv_r, precision):
    # x_ref: (TS, R*C)   w_ref: (R*C, R)   b_ref: SMEM (1,) f32   o_ref: (TS, 1) f32
    logits = jnp.dot(x_ref[...], w_ref[...],
                     preferred_element_type=jnp.float32,
                     precision=precision)                 # MXU -> (TS, R) f32
    prob = jax.nn.sigmoid(logits + b_ref[0])              # EUP
    # Mean over the R reads of each site (cross-lane reduce on the XLU).
    # NOTE: correctness of the masked partial tail tile relies on each output
    # row depending only on its own input row — keep this invariant if the
    # kernel is ever extended with cross-site ops.
    o_ref[...] = jnp.sum(prob, axis=-1, keepdims=True) * inv_r


def _round_up(x, m):
    return ((x + m - 1) // m) * m


def build_w_seg(weight, n_reads_per_site, dtype=jnp.float32):
    """Block-diagonal weight: W_seg[r*C + c, r] = w[c] (shape (R*C, R)).

    Build once per (weight, R) and pass into sigmoid_mean_pooling to avoid
    re-materializing it on every un-jitted call.
    """
    c = weight.shape[-1]
    r = n_reads_per_site
    w = weight.reshape(c).astype(jnp.float32)
    eye_r = jnp.eye(r, dtype=jnp.float32)
    return (eye_r[:, None, :] * w[None, :, None]).reshape(r * c, r).astype(dtype)


def _choose_site_tile(s, site_tile, itemsize):
    """Pick the sites-per-grid-step tile.

    Defaults: 2048 (4-byte input) / 4096 (2-byte input) sites per tile — with
    R*C = 640 that is ~5.2 MB per buffer, ~10.5 MB double-buffered, inside the
    16 MiB v5e default scoped VMEM.  When S is large enough, the tile is also
    clamped so the grid has >= ~4 steps (pipeline overlap; both v7x
    TensorCores get work).  An explicit site_tile is respected as an upper
    bound (rounded down to a multiple of 8 when it tiles S).
    """
    if site_tile is None:
        site_tile = 4096 if itemsize <= 2 else 2048
        if s > 32:
            site_tile = min(site_tile, max(8, _round_up(pl.cdiv(s, 4), 8)))
    if s <= site_tile:
        return s                       # single full-extent block
    return max(8, (site_tile // 8) * 8)  # (8, 128) second-minor constraint


def sigmoid_mean_pooling(x_flat, weight, bias, n_reads_per_site, *,
                         site_tile=None, w_seg=None, precision=None):
    """Forward pass of SigmoidMeanPooling.

    x_flat: (N, C) float32 or bfloat16 -- same layout as the PyTorch input.
            (Feed bf16 from the producer for ~2x wall-clock on all TPU gens;
            do NOT upcast/downcast here — dtype is preserved.)
    weight: (1, C), bias: (1,) -- parameters of nn.Linear(C, 1).
    w_seg:  optional precomputed block-diagonal weight from build_w_seg().
    precision: optional jax.lax.Precision for the MXU matmul
               (Precision.HIGHEST for exact f32 parity; free at this size).
    Returns (S,) float32 with S = N // n_reads_per_site.
    """
    n, c = x_flat.shape
    r = n_reads_per_site
    assert n % r == 0, "N must be a multiple of n_reads_per_site"
    s = n // r

    # Lane-dense view of the input (zero-copy: reads of a site are contiguous).
    x2 = x_flat.reshape(s, r * c)

    if w_seg is None:
        w_dtype = x2.dtype if x2.dtype == jnp.bfloat16 else jnp.float32
        w_seg = build_w_seg(weight, r, dtype=w_dtype)

    b1 = bias.reshape(1).astype(jnp.float32)

    ts = _choose_site_tile(s, site_tile, x2.dtype.itemsize)
    grid = (pl.cdiv(s, ts),)

    kernel = functools.partial(_sigmoid_mean_pool_kernel,
                               inv_r=1.0 / r, precision=precision)

    # Advisory cost estimate: helps XLA overlap the producer of x / consumer
    # of the output around the (otherwise opaque) custom call.
    cost = pl.CostEstimate(
        flops=2 * n * c + n,
        transcendentals=n,
        bytes_accessed=(x2.size * x2.dtype.itemsize
                        + w_seg.size * w_seg.dtype.itemsize
                        + s * 4),
    )

    out = pl.pallas_call(
        kernel,
        out_shape=jax.ShapeDtypeStruct((s, 1), jnp.float32),
        grid=grid,
        in_specs=[
            pl.BlockSpec((ts, r * c), lambda i: (i, 0)),         # x tile
            pl.BlockSpec((r * c, r), lambda i: (0, 0)),          # W_seg (resident)
            pl.BlockSpec(memory_space=pltpu.MemorySpace.SMEM),   # bias scalar
        ],
        out_specs=pl.BlockSpec((ts, 1), lambda i: (i, 0)),
        compiler_params=pltpu.CompilerParams(
            dimension_semantics=("parallel",)),
        cost_estimate=cost,
    )(x2, w_seg, b1)
    return out[:, 0]


def _reference(x_flat, weight, bias, n_reads_per_site):
    prob = jax.nn.sigmoid(x_flat.astype(jnp.float32) @ weight.T + bias)  # (N, 1)
    prob = prob.reshape(-1, n_reads_per_site)                            # (S, R)
    return prob.mean(axis=1)


if __name__ == "__main__":
    input_channel = 32
    n_reads_per_site = 20
    n_sites = 20
    n = n_sites * n_reads_per_site

    key = jax.random.PRNGKey(0)
    kx, kw, kb = jax.random.split(key, 3)

    x = jax.random.normal(kx, (n, input_channel), dtype=jnp.float32)

    # Deterministic Linear(input_channel, 1) init (PyTorch-style uniform bound).
    bound = 1.0 / math.sqrt(input_channel)
    weight = jax.random.uniform(kw, (1, input_channel), jnp.float32, -bound, bound)
    bias = jax.random.uniform(kb, (1,), jnp.float32, -bound, bound)

    ref = _reference(x, weight, bias, n_reads_per_site)

    # f32 path, forced small tile (8) to exercise multi-step pipelining plus a
    # masked partial tail tile (20 sites = 8 + 8 + 4).  Whole wrapper is under
    # jit so W_seg construction is constant-folded / fused, not rebuilt per call.
    fwd_f32 = jax.jit(functools.partial(
        sigmoid_mean_pooling, n_reads_per_site=n_reads_per_site, site_tile=8))
    out = jax.block_until_ready(fwd_f32(x, weight, bias))
    assert out.shape == (n_sites,)
    # Default MXU precision bf16-rounds f32 operands; 2e-3 absorbs that while
    # still catching layout / weight-construction bugs (which would be O(0.1)).
    assert jnp.allclose(out, ref, atol=2e-3, rtol=2e-3), (out, ref)

    # bf16-producer path (halves HBM traffic — the main perf lever) with
    # automatic tile selection.
    x_bf16 = x.astype(jnp.bfloat16)
    fwd_bf16 = jax.jit(functools.partial(
        sigmoid_mean_pooling, n_reads_per_site=n_reads_per_site))
    out_bf16 = jax.block_until_ready(fwd_bf16(x_bf16, weight, bias))
    assert out_bf16.shape == (n_sites,)
    assert jnp.allclose(out_bf16, ref, atol=1e-2, rtol=1e-2), (out_bf16, ref)

    print("KERNEL_OK")
</pallas_src>

<mosaic_0001>
module attributes {stable_mosaic.version = 11 : i64} {
  func.func @_sigmoid_mean_pool_kernel(%arg0: i32, %arg1: memref<8x640xf32, #tpu.memory_space<vmem>>, %arg2: memref<640x20xf32, #tpu.memory_space<vmem>>, %arg3: memref<1xf32, #tpu.memory_space<smem>>, %arg4: memref<8x1xf32, #tpu.memory_space<vmem>>) attributes {dimension_semantics = [#tpu.dimension_semantics<parallel>], iteration_bounds = array<i64: 3>, scalar_prefetch = 0 : i64, scratch_operands = 0 : i64, tpu.core_type = #tpu.core_type<tc>, window_params = [{transform_indices = @transform_0, window_bounds = array<i64: 8, 640>}, {pipeline_mode = #tpu.pipeline_mode<synchronous>, transform_indices = @transform_1, window_bounds = array<i64: 640, 20>}, {transform_indices = @transform_2, window_bounds = array<i64: 1>}, {transform_indices = @transform_3, window_bounds = array<i64: 8, 1>}]} {
    %c0 = arith.constant 0 : index
    %c0_0 = arith.constant 0 : index
    %0 = vector.load %arg1[%c0, %c0_0] : memref<8x640xf32, #tpu.memory_space<vmem>>, vector<8x640xf32>
    %c0_1 = arith.constant 0 : index
    %c0_2 = arith.constant 0 : index
    %1 = vector.load %arg2[%c0_1, %c0_2] : memref<640x20xf32, #tpu.memory_space<vmem>>, vector<640x20xf32>
    %cst = arith.constant dense<0.000000e+00> : vector<8x20xf32>
    %2 = tpu.matmul %0, %1, %cst {dimension_numbers = #tpu.dot_dimension_numbers<[1], [0], [0], [1], [0, 0, 1, 1], [], []>} : vector<8x640xf32>, vector<640x20xf32>, vector<8x20xf32> -> vector<8x20xf32>
    %c0_3 = arith.constant 0 : index
    %3 = memref.load %arg3[%c0_3] : memref<1xf32, #tpu.memory_space<smem>>
    %4 = vector.broadcast %3 : f32 to vector<8x20xf32>
    %5 = arith.addf %2, %4 : vector<8x20xf32>
    %6 = arith.negf %5 : vector<8x20xf32>
    %7 = math.exp %6 : vector<8x20xf32>
    %cst_4 = arith.constant 1.000000e+00 : f32
    %8 = vector.broadcast %cst_4 : f32 to vector<8x20xf32>
    %9 = arith.addf %8, %7 : vector<8x20xf32>
    %10 = arith.divf %8, %9 : vector<8x20xf32>
    %cst_5 = arith.constant dense<0.000000e+00> : vector<8xf32>
    %11 = vector.multi_reduction <add>, %10, %cst_5 [1] : vector<8x20xf32> to vector<8xf32>
    %12 = vector.shape_cast %11 : vector<8xf32> to vector<8x1xf32>
    %cst_6 = arith.constant 5.000000e-02 : f32
    %13 = vector.broadcast %cst_6 : f32 to vector<8x1xf32>
    %14 = arith.mulf %12, %13 : vector<8x1xf32>
    %c0_7 = arith.constant 0 : index
    %c0_8 = arith.constant 0 : index
    %15 = vector.load %arg4[%c0_7, %c0_8] : memref<8x1xf32, #tpu.memory_space<vmem>>, vector<8x1xf32>
    tpu.vector_store %arg4[%c0_7, %c0_8], %14 {strides = array<i32>} : memref<8x1xf32, #tpu.memory_space<vmem>>, vector<8x1xf32>,
    return
  }
  func.func @transform_0(%arg0: i32) -> (i32, i32) {
    %c0_i32 = arith.constant 0 : i32
    %c0_i32_0 = arith.constant 0 : i32
    return %arg0, %c0_i32 : i32, i32
  }
  func.func @transform_1(%arg0: i32) -> (i32, i32) {
    %c0_i32 = arith.constant 0 : i32
    %c0_i32_0 = arith.constant 0 : i32
    %c0_i32_1 = arith.constant 0 : i32
    return %c0_i32, %c0_i32_0 : i32, i32
  }
  func.func @transform_2(%arg0: i32) -> i32 {
    %c0_i32 = arith.constant 0 : i32
    %c0_i32_0 = arith.constant 0 : i32
    return %c0_i32 : i32
  }
  func.func @transform_3(%arg0: i32) -> (i32, i32) {
    %c0_i32 = arith.constant 0 : i32
    %c0_i32_0 = arith.constant 0 : i32
    return %arg0, %c0_i32 : i32, i32
  }
}

</mosaic_0001>

<llo_original>
// kernel: sigmoid_mean_pooling.1
$region0: #{sigmoid_mean_pooling.1}
  #allocation0 [shape = 'u32[]', space=smem, size = 0x4, offset = 0x4, fixed_abs, tag = 'smem constant byte address 0x4 - core index']
  #allocation1 [shape = 'u32[144,128]{1,0:T(1,128)}', space=vmem, size = 0x12000, scoped, tag = 'internal scratch']
  #allocation2 [shape = 'f32[1]{0:T(128)S(6)}', space=smem, size = 0x200, scoped, tag = 'scoped memory for sigmoid_mean_pooling.1']
  %s0 = inlined_call_operand.vmem [shape: f32[20,640], index: 0, kind: input, shape index: {}]
  %s1 = inlined_call_operand.vmem [shape: f32[640,20], index: 1, kind: input, shape index: {}]
  %s2 = inlined_call_operand.<no memory space> [shape: f32[1], index: 2, kind: input, shape index: {}]
  %s3 = inlined_call_operand.vmem [shape: f32[20,1], index: 3, kind: output, shape index: {}]
  %s4 = sld [smem:[#allocation0]]
  $region45: #{sigmoid_mean_pooling.1} parent=0
    _
  %s6 = ssub.s32 1, %s4
  %s7 = scalar_select 0, %s6, %s4
  %8 = sst [smem:[#allocation2]] %s2
  loop: start=0, step=1, limit=5
  $region2: #{sigmoid_mean_pooling.1} parent=0 // loop_pre_header
    _
  $region3: #{sigmoid_mean_pooling.1} parent=0 // loop_header
    %s10 = sphi 0, %s14
    %p11 = scmp.ge.s32.totalorder %s10, 5
    %s20 = sphi 0, %s22
    %s23 = sphi 0, %s20
    %s24 = sphi 0, %s23
    %s40 = sphi 0, %s24
    %s44 = sphi 0, %s44
    %s46 = sphi 0, %s44
    %s47 = sphi 0, %s46
    %s61 = sphi 0, %s47
    %s65 = sphi 0, %s65
    %s67 = sphi 0, %s65
    %s68 = sphi 0, %s67
    %s82 = sphi 0, %s68
    %s88 = sphi 0, %s90
    %s91 = sphi 0, %s88
    %s92 = sphi 0, %s91
    %s108 = sphi 0, %s92
  $region4: #{sigmoid_mean_pooling.1} parent=0 // loop_header_branch
    %13 = sbr.rel (%p11) target = $region8
  $region5: #{sigmoid_mean_pooling.1} parent=0 // loop_body
    %s15 = ssub.s32 %s10, 1
    %s16 = ssub.s32 %s10, 2
    %s17 = sadd.s32 %s10, 1
    %s18 = ssub.s32 %s10, %s17
    %p19 = scmp.eq.s32.totalorder %s18, 0
    %s21 = sadd.s32 %s20, 1
    %s22 = scalar_select %p19, %s20, %s21
    %p25 = pneg %p19
    %p26 = scmp.eq.s32.totalorder %s10, 2
    %p27 = por %p25, %p26
    %p28 = scmp.ne.s32.totalorder %s20, %s23
    %p29 = scmp.eq.s32.totalorder %s10, 0
    %p30 = por %p28, %p29
    %p31 = scmp.ne.s32.totalorder %s20, %s23
    %p32 = scmp.eq.s32.totalorder %s15, 2
    %p33 = por %p31, %p32
    %p34 = scmp.ne.s32.totalorder %s23, %s24
    %p35 = scmp.eq.s32.totalorder %s15, 0
    %p36 = por %p34, %p35
    %p37 = scmp.ne.s32.totalorder %s23, %s24
    %p38 = scmp.eq.s32.totalorder %s16, 2
    %p39 = por %p37, %p38
    %p41 = scmp.ne.s32.totalorder %s24, %s40
    %p42 = scmp.eq.s32.totalorder %s16, 0
    %p43 = por %p41, %p42
    %s45 = sadd.s32 %s44, 1
    %p48 = scmp.eq.s32.totalorder %s10, 2
    %p49 = scmp.ne.s32.totalorder %s44, %s46
    %p50 = scmp.eq.s32.totalorder %s10, 0
    %p51 = por %p49, %p50
    %p52 = scmp.ne.s32.totalorder %s44, %s46
    %p53 = scmp.eq.s32.totalorder %s15, 2
    %p54 = por %p52, %p53
    %p55 = scmp.ne.s32.totalorder %s46, %s47
    %p56 = scmp.eq.s32.totalorder %s15, 0
    %p57 = por %p55, %p56
    %p58 = scmp.ne.s32.totalorder %s46, %s47
    %p59 = scmp.eq.s32.totalorder %s16, 2
    %p60 = por %p58, %p59
    %p62 = scmp.ne.s32.totalorder %s47, %s61
    %p63 = scmp.eq.s32.totalorder %s16, 0
    %p64 = por %p62, %p63
    %s66 = sadd.s32 %s65, 1
    %p69 = scmp.eq.s32.totalorder %s10, 2
    %p70 = scmp.ne.s32.totalorder %s65, %s67
    %p71 = scmp.eq.s32.totalorder %s10, 0
    %p72 = por %p70, %p71
    %p73 = scmp.ne.s32.totalorder %s65, %s67
    %p74 = scmp.eq.s32.totalorder %s15, 2
    %p75 = por %p73, %p74
    %p76 = scmp.ne.s32.totalorder %s67, %s68
    %p77 = scmp.eq.s32.totalorder %s15, 0
    %p78 = por %p76, %p77
    %p79 = scmp.ne.s32.totalorder %s67, %s68
    %p80 = scmp.eq.s32.totalorder %s16, 2
    %p81 = por %p79, %p80
    %p83 = scmp.ne.s32.totalorder %s68, %s82
    %p84 = scmp.eq.s32.totalorder %s16, 0
    %p85 = por %p83, %p84
    %s86 = ssub.s32 %s10, %s17
    %p87 = scmp.eq.s32.totalorder %s86, 0
    %s89 = sadd.s32 %s88, 1
    %s90 = scalar_select %p87, %s88, %s89
    %p93 = pneg %p87
    %p94 = scmp.eq.s32.totalorder %s10, 2
    %p95 = por %p93, %p94
    %p96 = scmp.ne.s32.totalorder %s88, %s91
    %p97 = scmp.eq.s32.totalorder %s10, 0
    %p98 = por %p96, %p97
    %p99 = scmp.ne.s32.totalorder %s88, %s91
    %p100 = scmp.eq.s32.totalorder %s15, 2
    %p101 = por %p99, %p100
    %p102 = scmp.ne.s32.totalorder %s91, %s92
    %p103 = scmp.eq.s32.totalorder %s15, 0
    %p104 = por %p102, %p103
    %p105 = scmp.ne.s32.totalorder %s91, %s92
    %p106 = scmp.eq.s32.totalorder %s16, 2
    %p107 = por %p105, %p106
    %p109 = scmp.ne.s32.totalorder %s92, %s108
    %p110 = scmp.eq.s32.totalorder %s16, 0
    %p111 = por %p109, %p110
    %p112 = scmp.le.s32.totalorder 1, %s10
    %p113 = scmp.lt.s32.totalorder %s10, 4
    %p114 = pnand %p112, %p113
    %p115 = pneg %p114
    // Predicated region
    $region9: #{sigmoid_mean_pooling.1} parent=5 // pred_check
      _
    $region10: #{sigmoid_mean_pooling.1} parent=5 // pred_check_branch
      %117 = sbr.rel (%p114) target = $region12
    $region11: #{sigmoid_mean_pooling.1} parent=5 // pred_region
      %s118 = ssub.s32 %s10, 1
      // Predicated region
      $region13: #{sigmoid_mean_pooling.1} parent=11 // pred_check
        %p119 = pneg %p57
      $region14: #{sigmoid_mean_pooling.1} parent=11 // pred_check_branch
        %121 = sbr.rel (%p119) target = $region16
      $region15: #{sigmoid_mean_pooling.1} parent=11 // pred_region
        _
      $region16: #{sigmoid_mean_pooling.1} parent=11 // pred_fallthru
        _
      // Predicated region
      $region17: #{sigmoid_mean_pooling.1} parent=11 // pred_check
        %p122 = pneg %p78
      $region18: #{sigmoid_mean_pooling.1} parent=11 // pred_check_branch
        %124 = sbr.rel (%p122) target = $region20
      $region19: #{sigmoid_mean_pooling.1} parent=11 // pred_region
        _
      $region20: #{sigmoid_mean_pooling.1} parent=11 // pred_fallthru
        _
    $region12: #{sigmoid_mean_pooling.1} parent=5 // pred_fallthru
      _
    %p125 = scmp.lt.s32.totalorder %s10, 3
    // Predicated region
    $region21: #{sigmoid_mean_pooling.1} parent=5 // pred_check
      %p126 = pneg %p125
    $region22: #{sigmoid_mean_pooling.1} parent=5 // pred_check_branch
      %128 = sbr.rel (%p126) target = $region24
    $region23: #{sigmoid_mean_pooling.1} parent=5 // pred_region
      // Predicated region
      $region25: #{sigmoid_mean_pooling.1} parent=23 // pred_check
        %p129 = pneg %p30
      $region26: #{sigmoid_mean_pooling.1} parent=23 // pred_check_branch
        %131 = sbr.rel (%p129) target = $region28
      $region27: #{sigmoid_mean_pooling.1} parent=23 // pred_region
        %p132 = scmp.lt.s32.totalorder %s10, 2
        %s133 = scalar_select %p132, %s10, 2
        %s134 = smul.addr %s133, 5
        %s135 = smul.addr %s134, 8
        %s136 = scalar_lea.vmem %s0, %s135
      $region28: #{sigmoid_mean_pooling.1} parent=23 // pred_fallthru
        _
    $region24: #{sigmoid_mean_pooling.1} parent=5 // pred_fallthru
      _
    %p137 = scmp.le.s32.totalorder 1, %s10
    %p138 = scmp.lt.s32.totalorder %s10, 4
    %p139 = pnand %p137, %p138
    %p140 = pneg %p139
    // Predicated region
    $region29: #{sigmoid_mean_pooling.1} parent=5 // pred_check
      _
    $region30: #{sigmoid_mean_pooling.1} parent=5 // pred_check_branch
      %142 = sbr.rel (%p139) target = $region32
    $region31: #{sigmoid_mean_pooling.1} parent=5 // pred_region
      %s143 = ssub.s32 %s10, 1
      %p144 = scmp.lt.s32.totalorder %s15, 2
      %s145 = scalar_select %p144, %s15, 2
      %s146 = smul.addr %s145, 5
      %s147 = smul.addr %s146, 8
      %s148 = scalar_lea.vmem %s0, %s147
      %p149 = pneg %p36
      %p150 = pneg %p33
      %p151 = pneg %p57
      %p152 = pneg %p54
      %p153 = pneg %p78
      %p154 = pneg %p75
      %p155 = pneg %p104
      %p156 = pneg %p101
      %p157 = scmp.lt.s32.totalorder %s15, 2
      %s158 = scalar_select %p157, %s15, 2
      %s159 = smul.addr %s158, 8
      %s160 = scalar_lea.vmem %s3, %s159
      %p161 = scmp.lt.s32.totalorder %s15, 2
      %s162 = scalar_select %p161, %s15, 2
      %s163 = smul.addr %s162, 5
      %s164 = smul.addr %s163, 8
      %s165 = scalar_lea.vmem %s0, %s164
      %p166 = scmp.lt.s32.totalorder %s15, 2
      %s167 = scalar_select %p166, %s15, 2
      %s168 = smul.addr %s167, 8
      %s169 = scalar_lea.vmem %s3, %s168
      %v170 = vld [vmem:[%s165] sm:$0xff]
      %v171 = vld [vmem:[%s165 + $0x8] sm:$0xff]
      %v172 = vld [vmem:[%s165 + $0x10] sm:$0xff]
      %v173 = vld [vmem:[%s165 + $0x18] sm:$0xff]
      %v174 = vld [vmem:[%s165 + $0x20] sm:$0xff]
      %v175 = vld [vmem:[%s1] sm:$0xff]
      %v176 = vld [vmem:[%s1 + $0x8] sm:$0xff]
      %v177 = vld [vmem:[%s1 + $0x10] sm:$0xff]
      %v178 = vld [vmem:[%s1 + $0x18] sm:$0xff]
      %v179 = vld [vmem:[%s1 + $0x20] sm:$0xff]
      %v180 = vld [vmem:[%s1 + $0x28] sm:$0xff]
      %v181 = vld [vmem:[%s1 + $0x30] sm:$0xff]
      %v182 = vld [vmem:[%s1 + $0x38] sm:$0xff]
      %v183 = vld [vmem:[%s1 + $0x40] sm:$0xff]
      %v184 = vld [vmem:[%s1 + $0x48] sm:$0xff]
      %v185 = vld [vmem:[%s1 + $0x50] sm:$0xff]
      %v186 = vld [vmem:[%s1 + $0x58] sm:$0xff]
      %v187 = vld [vmem:[%s1 + $0x60] sm:$0xff]
      %v188 = vld [vmem:[%s1 + $0x68] sm:$0xff]
      %v189 = vld [vmem:[%s1 + $0x70] sm:$0xff]
      %v190 = vld [vmem:[%s1 + $0x78] sm:$0xff]
      %v191 = vld [vmem:[%s1 + $0x80] sm:$0xff]
      %v192 = vld [vmem:[%s1 + $0x88] sm:$0xff]
      %v193 = vld [vmem:[%s1 + $0x90] sm:$0xff]
      %v194 = vld [vmem:[%s1 + $0x98] sm:$0xff]
      %v195 = vld [vmem:[%s1 + $0xa0] sm:$0xff]
      %v196 = vld [vmem:[%s1 + $0xa8] sm:$0xff]
      %v197 = vld [vmem:[%s1 + $0xb0] sm:$0xff]
      %v198 = vld [vmem:[%s1 + $0xb8] sm:$0xff]
      %v199 = vld [vmem:[%s1 + $0xc0] sm:$0xff]
      %v200 = vld [vmem:[%s1 + $0xc8] sm:$0xff]
      %v201 = vld [vmem:[%s1 + $0xd0] sm:$0xff]
      %v202 = vld [vmem:[%s1 + $0xd8] sm:$0xff]
      %v203 = vld [vmem:[%s1 + $0xe0] sm:$0xff]
      %v204 = vld [vmem:[%s1 + $0xe8] sm:$0xff]
      %v205 = vld [vmem:[%s1 + $0xf0] sm:$0xff]
      %v206 = vld [vmem:[%s1 + $0xf8] sm:$0xff]
      %v207 = vld [vmem:[%s1 + $0x100] sm:$0xff]
      %v208 = vld [vmem:[%s1 + $0x108] sm:$0xff]
      %v209 = vld [vmem:[%s1 + $0x110] sm:$0xff]
      %v210 = vld [vmem:[%s1 + $0x118] sm:$0xff]
      %v211 = vld [vmem:[%s1 + $0x120] sm:$0xff]
      %v212 = vld [vmem:[%s1 + $0x128] sm:$0xff]
      %v213 = vld [vmem:[%s1 + $0x130] sm:$0xff]
      %v214 = vld [vmem:[%s1 + $0x138] sm:$0xff]
      %v215 = vld [vmem:[%s1 + $0x140] sm:$0xff]
      %v216 = vld [vmem:[%s1 + $0x148] sm:$0xff]
      %v217 = vld [vmem:[%s1 + $0x150] sm:$0xff]
      %v218 = vld [vmem:[%s1 + $0x158] sm:$0xff]
      %v219 = vld [vmem:[%s1 + $0x160] sm:$0xff]
      %v220 = vld [vmem:[%s1 + $0x168] sm:$0xff]
      %v221 = vld [vmem:[%s1 + $0x170] sm:$0xff]
      %v222 = vld [vmem:[%s1 + $0x178] sm:$0xff]
      %v223 = vld [vmem:[%s1 + $0x180] sm:$0xff]
      %v224 = vld [vmem:[%s1 + $0x188] sm:$0xff]
      %v225 = vld [vmem:[%s1 + $0x190] sm:$0xff]
      %v226 = vld [vmem:[%s1 + $0x198] sm:$0xff]
      %v227 = vld [vmem:[%s1 + $0x1a0] sm:$0xff]
      %v228 = vld [vmem:[%s1 + $0x1a8] sm:$0xff]
      %v229 = vld [vmem:[%s1 + $0x1b0] sm:$0xff]
      %v230 = vld [vmem:[%s1 + $0x1b8] sm:$0xff]
      %v231 = vld [vmem:[%s1 + $0x1c0] sm:$0xff]
      %v232 = vld [vmem:[%s1 + $0x1c8] sm:$0xff]
      %v233 = vld [vmem:[%s1 + $0x1d0] sm:$0xff]
      %v234 = vld [vmem:[%s1 + $0x1d8] sm:$0xff]
      %v235 = vld [vmem:[%s1 + $0x1e0] sm:$0xff]
      %v236 = vld [vmem:[%s1 + $0x1e8] sm:$0xff]
      %v237 = vld [vmem:[%s1 + $0x1f0] sm:$0xff]
      %v238 = vld [vmem:[%s1 + $0x1f8] sm:$0xff]
      %v239 = vld [vmem:[%s1 + $0x200] sm:$0xff]
      %v240 = vld [vmem:[%s1 + $0x208] sm:$0xff]
      %v241 = vld [vmem:[%s1 + $0x210] sm:$0xff]
      %v242 = vld [vmem:[%s1 + $0x218] sm:$0xff]
      %v243 = vld [vmem:[%s1 + $0x220] sm:$0xff]
      %v244 = vld [vmem:[%s1 + $0x228] sm:$0xff]
      %v245 = vld [vmem:[%s1 + $0x230] sm:$0xff]
      %v246 = vld [vmem:[%s1 + $0x238] sm:$0xff]
      %v247 = vld [vmem:[%s1 + $0x240] sm:$0xff]
      %v248 = vld [vmem:[%s1 + $0x248] sm:$0xff]
      %v249 = vld [vmem:[%s1 + $0x250] sm:$0xff]
      %v250 = vld [vmem:[%s1 + $0x258] sm:$0xff]
      %v251 = vld [vmem:[%s1 + $0x260] sm:$0xff]
      %v252 = vld [vmem:[%s1 + $0x268] sm:$0xff]
      %v253 = vld [vmem:[%s1 + $0x270] sm:$0xff]
      %v254 = vld [vmem:[%s1 + $0x278] sm:$0xff]
      %s255 = sld [smem:[#allocation2]]
      %v256 = vstv %s255
      %257 = vmatprep.subr.mxu0 0.0
      %258 = vmatpush1.msra.mxu0 %v175
      %259 = vmatprep.subr.mxu0 0.0
      %260 = vmatpush1.msra.mxu0 %v176
      %261 = vmatprep.subr.mxu0 0.0
      %262 = vmatpush1.msra.mxu0 %v177
      %263 = vmatprep.subr.mxu0 0.0
      %264 = vmatpush1.msra.mxu0 %v178
      %265 = vmatprep.subr.mxu0 0.0
      %266 = vmatpush1.msra.mxu0 %v179
      %267 = vmatprep.subr.mxu0 0.0
      %268 = vmatpush1.msra.mxu0 %v180
      %269 = vmatprep.subr.mxu0 0.0
      %270 = vmatpush1.msra.mxu0 %v181
      %271 = vmatprep.subr.mxu0 0.0
      %272 = vmatpush1.msra.mxu0 %v182
      %273 = vmatprep.subr.mxu0 0.0
      %274 = vmatpush1.msra.mxu0 %v183
      %275 = vmatprep.subr.mxu0 0.0
      %276 = vmatpush1.msra.mxu0 %v184
      %277 = vmatprep.subr.mxu0 0.0
      %278 = vmatpush1.msra.mxu0 %v185
      %279 = vmatprep.subr.mxu0 0.0
      %280 = vmatpush1.msra.mxu0 %v186
      %281 = vmatprep.subr.mxu0 0.0
      %282 = vmatpush1.msra.mxu0 %v187
      %283 = vmatprep.subr.mxu0 0.0
      %284 = vmatpush1.msra.mxu0 %v188
      %285 = vmatprep.subr.mxu0 0.0
      %286 = vmatpush1.msra.mxu0 %v189
      %287 = vmatprep.subr.mxu0 0.0
      %288 = vmatpush1.msra.mxu0 %v190
      %289 = vmatprep.subr.mxu0 0.0
      %290 = vmatpush1.msra.mxu0 %v191
      %291 = vmatprep.subr.mxu0 0.0
      %292 = vmatpush1.msra.mxu0 %v192
      %293 = vmatprep.subr.mxu0 0.0
      %294 = vmatpush1.msra.mxu0 %v193
      %295 = vmatprep.subr.mxu0 0.0
      %296 = vmatpush1.msra.mxu0 %v194
      %297 = vmatprep.subr.mxu0 0.0
      %298 = vmatpush1.msra.mxu0 %v195
      %299 = vmatprep.subr.mxu0 0.0
      %300 = vmatpush1.msra.mxu0 %v196
      %301 = vmatprep.subr.mxu0 0.0
      %302 = vmatpush1.msra.mxu0 %v197
      %303 = vmatprep.subr.mxu0 0.0
      %304 = vmatpush1.msra.mxu0 %v198
      %305 = vmatprep.subr.mxu0 0.0
      %306 = vmatpush1.msra.mxu0 %v199
      %307 = vmatprep.subr.mxu0 0.0
      %308 = vmatpush1.msra.mxu0 %v200
      %309 = vmatprep.subr.mxu0 0.0
      %310 = vmatpush1.msra.mxu0 %v201
      %311 = vmatprep.subr.mxu0 0.0
      %312 = vmatpush1.msra.mxu0 %v202
      %313 = vmatprep.subr.mxu0 0.0
      %314 = vmatpush1.msra.mxu0 %v203
      %315 = vmatprep.subr.mxu0 0.0
      %316 = vmatpush1.msra.mxu0 %v204
      %317 = vmatprep.subr.mxu0 0.0
      %318 = vmatpush1.msra.mxu0 %v205
      %319 = vmatprep.subr.mxu0 0.0
      %320 = vmatpush1.msra.mxu0 %v206
      %321 = vmatprep.mubr.f32.mxu0 %v171
      %322 = vmatmul.mubr.f32.gmra.mrb[0].mxu0 %v170
      %v323 = vpop.f32.mrb[0].mxu0
      %v324 = vadd.f32 %v256, %v323
      %v325 = vpop.f32.mrb[0].mxu0
      %326 = vdwg.mxu0
      %327 = vmatprep.subr.mxu0 0.0
      %328 = vmatpush1.msra.mxu0 %v207
      %329 = vmatprep.subr.mxu0 0.0
      %330 = vmatpush1.msra.mxu0 %v208
      %331 = vmatprep.subr.mxu0 0.0
      %332 = vmatpush1.msra.mxu0 %v209
      %333 = vmatprep.subr.mxu0 0.0
      %334 = vmatpush1.msra.mxu0 %v210
      %335 = vmatprep.subr.mxu0 0.0
      %336 = vmatpush1.msra.mxu0 %v211
      %337 = vmatprep.subr.mxu0 0.0
      %338 = vmatpush1.msra.mxu0 %v212
      %339 = vmatprep.subr.mxu0 0.0
      %340 = vmatpush1.msra.mxu0 %v213
      %341 = vmatprep.subr.mxu0 0.0
      %342 = vmatpush1.msra.mxu0 %v214
      %343 = vmatprep.subr.mxu0 0.0
      %344 = vmatpush1.msra.mxu0 %v215
      %345 = vmatprep.subr.mxu0 0.0
      %346 = vmatpush1.msra.mxu0 %v216
      %347 = vmatprep.subr.mxu0 0.0
      %348 = vmatpush1.msra.mxu0 %v217
      %349 = vmatprep.subr.mxu0 0.0
      %350 = vmatpush1.msra.mxu0 %v218
      %351 = vmatprep.subr.mxu0 0.0
      %352 = vmatpush1.msra.mxu0 %v219
      %353 = vmatprep.subr.mxu0 0.0
      %354 = vmatpush1.msra.mxu0 %v220
      %355 = vmatprep.subr.mxu0 0.0
      %356 = vmatpush1.msra.mxu0 %v221
      %357 = vmatprep.subr.mxu0 0.0
      %358 = vmatpush1.msra.mxu0 %v222
      %359 = vmatprep.subr.mxu0 0.0
      %360 = vmatpush1.msra.mxu0 %v223
      %361 = vmatprep.subr.mxu0 0.0
      %362 = vmatpush1.msra.mxu0 %v224
      %363 = vmatprep.subr.mxu0 0.0
      %364 = vmatpush1.msra.mxu0 %v225
      %365 = vmatprep.subr.mxu0 0.0
      %366 = vmatpush1.msra.mxu0 %v226
      %367 = vmatprep.subr.mxu0 0.0
      %368 = vmatpush1.msra.mxu0 %v227
      %369 = vmatprep.subr.mxu0 0.0
      %370 = vmatpush1.msra.mxu0 %v228
      %371 = vmatprep.subr.mxu0 0.0
      %372 = vmatpush1.msra.mxu0 %v229
      %373 = vmatprep.subr.mxu0 0.0
      %374 = vmatpush1.msra.mxu0 %v230
      %375 = vmatprep.subr.mxu0 0.0
      %376 = vmatpush1.msra.mxu0 %v231
      %377 = vmatprep.subr.mxu0 0.0
      %378 = vmatpush1.msra.mxu0 %v232
      %379 = vmatprep.subr.mxu0 0.0
      %380 = vmatpush1.msra.mxu0 %v233
      %381 = vmatprep.subr.mxu0 0.0
      %382 = vmatpush1.msra.mxu0 %v234
      %383 = vmatprep.subr.mxu0 0.0
      %384 = vmatpush1.msra.mxu0 %v235
      %385 = vmatprep.subr.mxu0 0.0
      %386 = vmatpush1.msra.mxu0 %v236
      %387 = vmatprep.subr.mxu0 0.0
      %388 = vmatpush1.msra.mxu0 %v237
      %389 = vmatprep.subr.mxu0 0.0
      %390 = vmatpush1.msra.mxu0 %v238
      %391 = vmatprep.mubr.f32.mxu0 %v173
      %392 = vmatmul.mubr.f32.gmra.mrb[0].mxu0 %v172
      %v393 = vpop.f32.mrb[0].mxu0
      %v394 = vadd.f32 %v324, %v393
      %v395 = vpop.f32.mrb[0].mxu0
      %396 = vdwg.mxu0
      %397 = vmatprep.subr.mxu0 0.0
      %398 = vmatpush1.msra.mxu0 %v239
      %399 = vmatprep.subr.mxu0 0.0
      %400 = vmatpush1.msra.mxu0 %v240
      %401 = vmatprep.subr.mxu0 0.0
      %402 = vmatpush1.msra.mxu0 %v241
      %403 = vmatprep.subr.mxu0 0.0
      %404 = vmatpush1.msra.mxu0 %v242
      %405 = vmatprep.subr.mxu0 0.0
      %406 = vmatpush1.msra.mxu0 %v243
      %407 = vmatprep.subr.mxu0 0.0
      %408 = vmatpush1.msra.mxu0 %v244
      %409 = vmatprep.subr.mxu0 0.0
      %410 = vmatpush1.msra.mxu0 %v245
      %411 = vmatprep.subr.mxu0 0.0
      %412 = vmatpush1.msra.mxu0 %v246
      %413 = vmatprep.subr.mxu0 0.0
      %414 = vmatpush1.msra.mxu0 %v247
      %415 = vmatprep.subr.mxu0 0.0
      %416 = vmatpush1.msra.mxu0 %v248
      %417 = vmatprep.subr.mxu0 0.0
      %418 = vmatpush1.msra.mxu0 %v249
      %419 = vmatprep.subr.mxu0 0.0
      %420 = vmatpush1.msra.mxu0 %v250
      %421 = vmatprep.subr.mxu0 0.0
      %422 = vmatpush1.msra.mxu0 %v251
      %423 = vmatprep.subr.mxu0 0.0
      %424 = vmatpush1.msra.mxu0 %v252
      %425 = vmatprep.subr.mxu0 0.0
      %426 = vmatpush1.msra.mxu0 %v253
      %427 = vmatprep.subr.mxu0 0.0
      %428 = vmatpush1.msra.mxu0 %v254
      %429 = vmatprep.subr.mxu0 0.0
      %430 = vmatpush1.msra.mxu0 0.0
      %431 = vmatprep.subr.mxu0 0.0
      %432 = vmatpush1.msra.mxu0 0.0
      %433 = vmatprep.subr.mxu0 0.0
      %434 = vmatpush1.msra.mxu0 0.0
      %435 = vmatprep.subr.mxu0 0.0
      %436 = vmatpush1.msra.mxu0 0.0
      %437 = vmatprep.subr.mxu0 0.0
      %438 = vmatpush1.msra.mxu0 0.0
      %439 = vmatprep.subr.mxu0 0.0
      %440 = vmatpush1.msra.mxu0 0.0
      %441 = vmatprep.subr.mxu0 0.0
      %442 = vmatpush1.msra.mxu0 0.0
      %443 = vmatprep.subr.mxu0 0.0
      %444 = vmatpush1.msra.mxu0 0.0
      %445 = vmatprep.subr.mxu0 0.0
      %446 = vmatpush1.msra.mxu0 0.0
      %447 = vmatprep.subr.mxu0 0.0
      %448 = vmatpush1.msra.mxu0 0.0
      %449 = vmatprep.subr.mxu0 0.0
      %450 = vmatpush1.msra.mxu0 0.0
      %451 = vmatprep.subr.mxu0 0.0
      %452 = vmatpush1.msra.mxu0 0.0
      %453 = vmatprep.subr.mxu0 0.0
      %454 = vmatpush1.msra.mxu0 0.0
      %455 = vmatprep.subr.mxu0 0.0
      %456 = vmatpush1.msra.mxu0 0.0
      %457 = vmatprep.subr.mxu0 0.0
      %458 = vmatpush1.msra.mxu0 0.0
      %459 = vmatprep.subr.mxu0 0.0
      %460 = vmatpush1.msra.mxu0 0.0
      %461 = vmatprep.mubr.f32.mxu0 0.0
      %462 = vmatmul.mubr.f32.gmra.mrb[0].mxu0 %v174
      %v463 = vpop.f32.mrb[0].mxu0
      %v464 = vadd.f32 %v394, %v463
      %v465 = vpop.f32.mrb[0].mxu0
      %466 = vdwg.mxu0
      %v467 = vxor.u32 %v464, 2147483648
      %v468 = vmul.f32 %v467, 1.442695
      %v469 = vpow.pop %v468
      %v470 = vadd.f32 %v469, 1.0
      %v471 = vrcp.pop %v470
      %v472 = vmul.f32 1.0, %v471
      %vm473 = vcmask 162816
      %v474 = vsel %vm473, %v472, 0.0
      %475 = vadd.xlane.f32.xlu0 %v474
      %v476 = vpop.xlane.xlu0 %475
      %v477 = vmul.f32 %v476, 0.05
      %vm478 = vcmask 7168
      %479 = vst.msk [vmem:[%s169] sm:$0xff] %vm478, %v477
      %p480 = scmp.lt.s32.totalorder %s15, 2
      %s481 = scalar_select %p480, %s15, 2
      %s482 = smul.addr %s481, 8
      %s483 = scalar_lea.vmem %s3, %s482
      // Predicated region
      $region33: #{sigmoid_mean_pooling.1} parent=31 // pred_check
        %p484 = pneg %p101
      $region34: #{sigmoid_mean_pooling.1} parent=31 // pred_check_branch
        %486 = sbr.rel (%p484) target = $region36
      $region35: #{sigmoid_mean_pooling.1} parent=31 // pred_region
        _
      $region36: #{sigmoid_mean_pooling.1} parent=31 // pred_fallthru
        _
    $region32: #{sigmoid_mean_pooling.1} parent=5 // pred_fallthru
      _
    %p487 = scmp.le.s32.totalorder 2, %s10
    // Predicated region
    $region37: #{sigmoid_mean_pooling.1} parent=5 // pred_check
      %p488 = pneg %p487
    $region38: #{sigmoid_mean_pooling.1} parent=5 // pred_check_branch
      %490 = sbr.rel (%p488) target = $region40
    $region39: #{sigmoid_mean_pooling.1} parent=5 // pred_region
      %s491 = ssub.s32 %s10, 2
      // Predicated region
      $region41: #{sigmoid_mean_pooling.1} parent=39 // pred_check
        %p492 = pneg %p107
      $region42: #{sigmoid_mean_pooling.1} parent=39 // pred_check_branch
        %494 = sbr.rel (%p492) target = $region44
      $region43: #{sigmoid_mean_pooling.1} parent=39 // pred_region
        %p495 = scmp.lt.s32.totalorder %s16, 2
        %s496 = scalar_select %p495, %s16, 2
        %s497 = smul.addr %s496, 8
        %s498 = scalar_lea.vmem %s3, %s497
      $region44: #{sigmoid_mean_pooling.1} parent=39 // pred_fallthru
        _
    $region40: #{sigmoid_mean_pooling.1} parent=5 // pred_fallthru
      _
  $region6: #{sigmoid_mean_pooling.1} parent=0 // loop_footer
    %s14 = sadd.s32 1, %s10
  $region7: #{sigmoid_mean_pooling.1} parent=0 // loop_footer_branch
    %9 = sbr.rel target = $region3
  $region8: #{sigmoid_mean_pooling.1} parent=0 // loop_exit
    _

</llo_original>
